<compile_context>
chip_gen: v7x
topology: tpu7x:2x2x1
jax: 0.10.0
libtpu: 0.0.40
codegen_flags: <defaults>
</compile_context>

<pallas_src>
import functools

import jax
import jax.numpy as jnp
from jax.experimental import pallas as pl
from jax.experimental.pallas import tpu as pltpu

_LANE = 128
_SUBLANE = 8


def _round_up(n, m):
    return ((n + m - 1) // m) * m


def _pad_axis(a, target, axis):
    pad = target - a.shape[axis]
    if pad == 0:
        return a
    widths = [(0, 0)] * a.ndim
    widths[axis] = (0, pad)
    return jnp.pad(a, widths)


def _mlp_kernel(n_hidden, *refs):
    """Fused MLP: (Linear -> LeakyReLU(0.2)) * n_hidden -> Linear(->1) -> Sigmoid.

    refs = (x_ref,
            w0(bf16), b0(f32), ..., w{n_hidden-1}(bf16), b{n_hidden-1}(f32),
            w_last(f32, (1, hid)), b_last(f32, (1, 1)),
            out_ref)
    """
    x_ref = refs[0]
    out_ref = refs[-1]
    params = refs[1:-1]

    h = x_ref[...]  # f32 (bm, d0p)

    # Hidden layers: bf16 MXU matmul with f32 accumulation; bias + activation f32.
    for i in range(n_hidden):
        w = params[2 * i][...]                  # bf16 (d_i, d_{i+1})
        b = params[2 * i + 1][...]              # f32  (1,  d_{i+1})
        h = jnp.dot(h.astype(jnp.bfloat16), w,
                    preferred_element_type=jnp.float32) + b
        h = jnp.maximum(h, 0.2 * h)             # LeakyReLU(0.2), one VALU op

    # Final layer: VPU multiply + cross-lane reduce instead of an N=1 matmul.
    w_last = params[2 * n_hidden][...]          # f32 (1, d_last)
    b_last = params[2 * n_hidden + 1][...]      # f32 (1, 1)
    z = jnp.sum(h * w_last, axis=-1, keepdims=True) + b_last  # (bm, 1)

    # Numerically stable sigmoid; reciprocal goes to the EUP slot.
    e = jnp.exp(-jnp.abs(z))                    # e in (0, 1], no overflow
    r = pl.reciprocal(1.0 + e, approx=True)     # 1 / (1 + e)
    out_ref[...] = jnp.where(z >= 0, r, 1.0 - r).astype(out_ref.dtype)


def discriminator_forward(x, weights, biases, *, block_b=256):
    """Runs the fused discriminator MLP as a single Pallas kernel.

    x:       (B, emb_dim) float32
    weights: list of (in_dim, out_dim) float32 arrays (last one is (hid, 1))
    biases:  list of (1, out_dim) float32 arrays
    returns: (B,) float32 in (0, 1)
    """
    B, emb_dim = x.shape
    n_layers = len(weights)
    n_hidden = n_layers - 1
    assert weights[0].shape[0] == emb_dim
    assert weights[-1].shape[1] == 1

    # ---- feature dims zero-padded to lane multiples (128) ------------------
    in_dims = [w.shape[0] for w in weights]                 # d0 .. d_{n_hidden}
    in_dims_p = [_round_up(d, _LANE) for d in in_dims]

    x_p = _pad_axis(x.astype(jnp.float32), in_dims_p[0], axis=1)

    flat_params = []
    for i in range(n_hidden):
        w = _pad_axis(_pad_axis(weights[i], in_dims_p[i], 0), in_dims_p[i + 1], 1)
        b = _pad_axis(biases[i], in_dims_p[i + 1], 1)
        flat_params.append(w.astype(jnp.bfloat16))          # full-rate MXU path
        flat_params.append(b.astype(jnp.float32))
    # Last layer kept as an f32 (1, hid) row for the VPU multiply + reduce.
    w_last = _pad_axis(weights[-1].reshape(1, -1),
                       in_dims_p[-1], axis=1).astype(jnp.float32)
    b_last = biases[-1].reshape(1, 1).astype(jnp.float32)
    flat_params.extend([w_last, b_last])

    # ---- batch tiling -------------------------------------------------------
    bm = min(block_b, _round_up(B, _SUBLANE))
    bm = _round_up(bm, _SUBLANE)
    b_pad = _round_up(B, bm)
    if b_pad != B:
        x_p = _pad_axis(x_p, b_pad, axis=0)
    grid = b_pad // bm

    # Weights/biases: whole-array VMEM residents -> single copy, no per-step
    # double buffering of constant data.
    const_spec = pl.BlockSpec(memory_space=pltpu.MemorySpace.VMEM)
    in_specs = [pl.BlockSpec((bm, in_dims_p[0]), lambda i: (i, 0))]
    in_specs += [const_spec] * len(flat_params)

    # ---- VMEM budget: single-buffered params + double-buffered x/out blocks
    #      + f32 activation headroom.
    param_bytes = sum(int(p.size) * p.dtype.itemsize for p in flat_params)
    max_dim = max(in_dims_p)
    act_bytes = 4 * bm * max_dim * 4
    io_bytes = 2 * bm * in_dims_p[0] * 4 + 2 * bm * _LANE * 4
    vmem_limit = int(max(param_bytes + act_bytes + io_bytes + (4 << 20), 32 << 20))

    out = pl.pallas_call(
        functools.partial(_mlp_kernel, n_hidden),
        grid=(grid,),
        in_specs=in_specs,
        out_specs=pl.BlockSpec((bm, 1), lambda i: (i, 0)),
        out_shape=jax.ShapeDtypeStruct((b_pad, 1), jnp.float32),
        compiler_params=pltpu.CompilerParams(
            dimension_semantics=("parallel",),
            vmem_limit_bytes=vmem_limit,
        ),
    )(x_p, *flat_params)
    return out.reshape(-1)[:B]


def init_discriminator_params(key, emb_dim, dis_hid_dim, dis_layers):
    """Deterministic PyTorch-style (uniform +-1/sqrt(fan_in)) initialization."""
    weights, biases = [], []
    for i in range(dis_layers + 1):
        input_dim = emb_dim if i == 0 else dis_hid_dim
        output_dim = 1 if i == dis_layers else dis_hid_dim
        key, kw, kb = jax.random.split(key, 3)
        bound = 1.0 / jnp.sqrt(jnp.float32(input_dim))
        # stored as (in_dim, out_dim): transpose of nn.Linear's (out, in)
        w = jax.random.uniform(kw, (input_dim, output_dim), jnp.float32,
                               minval=-bound, maxval=bound)
        b = jax.random.uniform(kb, (1, output_dim), jnp.float32,
                               minval=-bound, maxval=bound)
        weights.append(w)
        biases.append(b)
    return weights, biases


def _reference_forward(x, weights, biases):
    """Plain-JAX reference replicating the kernel's bf16 mixed precision."""
    h = x.astype(jnp.float32)
    n = len(weights)
    for i in range(n - 1):
        w = weights[i].astype(jnp.bfloat16).astype(jnp.float32)
        h = jnp.dot(h.astype(jnp.bfloat16).astype(jnp.float32), w) + biases[i]
        h = jnp.maximum(h, 0.2 * h)
    z = h @ weights[-1] + biases[-1]
    return jax.nn.sigmoid(z).reshape(-1)


if __name__ == "__main__":
    # Small shapes consistent with the module: params.emb_dim, params.dis_layers,
    # params.dis_hid_dim.
    EMB_DIM = 32
    DIS_HID_DIM = 64
    DIS_LAYERS = 2
    BATCH = 8

    key = jax.random.PRNGKey(0)
    key, kx = jax.random.split(key)
    x = jax.random.normal(kx, (BATCH, EMB_DIM), jnp.float32)

    weights, biases = init_discriminator_params(key, EMB_DIM, DIS_HID_DIM,
                                                DIS_LAYERS)

    out = jax.block_until_ready(discriminator_forward(x, weights, biases))
    ref = _reference_forward(x, weights, biases)

    assert out.shape == (BATCH,)
    assert jnp.allclose(out, ref, atol=5e-3, rtol=5e-3), (out, ref)

    print("KERNEL_OK")
</pallas_src>

<mosaic_0001>
module attributes {stable_mosaic.version = 11 : i64} {
  func.func @_mlp_kernel(%arg0: i32, %arg1: memref<8x128xf32, #tpu.memory_space<vmem>>, %arg2: memref<128x128xbf16, #tpu.memory_space<vmem>>, %arg3: memref<1x128xf32, #tpu.memory_space<vmem>>, %arg4: memref<128x128xbf16, #tpu.memory_space<vmem>>, %arg5: memref<1x128xf32, #tpu.memory_space<vmem>>, %arg6: memref<1x128xf32, #tpu.memory_space<vmem>>, %arg7: memref<1x1xf32, #tpu.memory_space<vmem>>, %arg8: memref<8x1xf32, #tpu.memory_space<vmem>>) attributes {dimension_semantics = [#tpu.dimension_semantics<parallel>], iteration_bounds = array<i64: 1>, scalar_prefetch = 0 : i64, scratch_operands = 0 : i64, tpu.core_type = #tpu.core_type<tc>, window_params = [{transform_indices = @transform_0, window_bounds = array<i64: 8, 128>}, {pipeline_mode = #tpu.pipeline_mode<synchronous>, transform_indices = @transform_1, window_bounds = array<i64: 128, 128>}, {pipeline_mode = #tpu.pipeline_mode<synchronous>, transform_indices = @transform_2, window_bounds = array<i64: 1, 128>}, {pipeline_mode = #tpu.pipeline_mode<synchronous>, transform_indices = @transform_3, window_bounds = array<i64: 128, 128>}, {pipeline_mode = #tpu.pipeline_mode<synchronous>, transform_indices = @transform_4, window_bounds = array<i64: 1, 128>}, {pipeline_mode = #tpu.pipeline_mode<synchronous>, transform_indices = @transform_5, window_bounds = array<i64: 1, 128>}, {pipeline_mode = #tpu.pipeline_mode<synchronous>, transform_indices = @transform_6, window_bounds = array<i64: 1, 1>}, {transform_indices = @transform_7, window_bounds = array<i64: 8, 1>}]} {
    %c0 = arith.constant 0 : index
    %c0_0 = arith.constant 0 : index
    %0 = vector.load %arg1[%c0, %c0_0] : memref<8x128xf32, #tpu.memory_space<vmem>>, vector<8x128xf32>
    %c0_1 = arith.constant 0 : index
    %c0_2 = arith.constant 0 : index
    %1 = vector.load %arg2[%c0_1, %c0_2] : memref<128x128xbf16, #tpu.memory_space<vmem>>, vector<128x128xbf16>
    %c0_3 = arith.constant 0 : index
    %c0_4 = arith.constant 0 : index
    %2 = vector.load %arg3[%c0_3, %c0_4] : memref<1x128xf32, #tpu.memory_space<vmem>>, vector<1x128xf32>
    %3 = arith.truncf %0 : vector<8x128xf32> to vector<8x128xbf16>
    %cst = arith.constant dense<0.000000e+00> : vector<8x128xf32>
    %4 = tpu.matmul %3, %1, %cst {dimension_numbers = #tpu.dot_dimension_numbers<[1], [0], [0], [1], [0, 0, 1, 1], [], []>} : vector<8x128xbf16>, vector<128x128xbf16>, vector<8x128xf32> -> vector<8x128xf32>
    %5 = vector.broadcast %2 : vector<1x128xf32> to vector<8x128xf32>
    %6 = arith.addf %4, %5 : vector<8x128xf32>
    %cst_5 = arith.constant 2.000000e-01 : f32
    %7 = vector.broadcast %cst_5 : f32 to vector<8x128xf32>
    %8 = arith.mulf %7, %6 : vector<8x128xf32>
    %9 = arith.maximumf %6, %8 : vector<8x128xf32>
    %c0_6 = arith.constant 0 : index
    %c0_7 = arith.constant 0 : index
    %10 = vector.load %arg4[%c0_6, %c0_7] : memref<128x128xbf16, #tpu.memory_space<vmem>>, vector<128x128xbf16>
    %c0_8 = arith.constant 0 : index
    %c0_9 = arith.constant 0 : index
    %11 = vector.load %arg5[%c0_8, %c0_9] : memref<1x128xf32, #tpu.memory_space<vmem>>, vector<1x128xf32>
    %12 = arith.truncf %9 : vector<8x128xf32> to vector<8x128xbf16>
    %cst_10 = arith.constant dense<0.000000e+00> : vector<8x128xf32>
    %13 = tpu.matmul %12, %10, %cst_10 {dimension_numbers = #tpu.dot_dimension_numbers<[1], [0], [0], [1], [0, 0, 1, 1], [], []>} : vector<8x128xbf16>, vector<128x128xbf16>, vector<8x128xf32> -> vector<8x128xf32>
    %14 = vector.broadcast %11 : vector<1x128xf32> to vector<8x128xf32>
    %15 = arith.addf %13, %14 : vector<8x128xf32>
    %cst_11 = arith.constant 2.000000e-01 : f32
    %16 = vector.broadcast %cst_11 : f32 to vector<8x128xf32>
    %17 = arith.mulf %16, %15 : vector<8x128xf32>
    %18 = arith.maximumf %15, %17 : vector<8x128xf32>
    %c0_12 = arith.constant 0 : index
    %c0_13 = arith.constant 0 : index
    %19 = vector.load %arg6[%c0_12, %c0_13] : memref<1x128xf32, #tpu.memory_space<vmem>>, vector<1x128xf32>
    %c0_14 = arith.constant 0 : index
    %c0_15 = arith.constant 0 : index
    %20 = vector.load %arg7[%c0_14, %c0_15] : memref<1x1xf32, #tpu.memory_space<vmem>>, vector<1x1xf32>
    %21 = vector.broadcast %19 : vector<1x128xf32> to vector<8x128xf32>
    %22 = arith.mulf %18, %21 : vector<8x128xf32>
    %cst_16 = arith.constant dense<0.000000e+00> : vector<8xf32>
    %23 = vector.multi_reduction <add>, %22, %cst_16 [1] : vector<8x128xf32> to vector<8xf32>
    %24 = vector.shape_cast %23 : vector<8xf32> to vector<8x1xf32>
    %25 = vector.broadcast %20 : vector<1x1xf32> to vector<8x1xf32>
    %26 = arith.addf %24, %25 : vector<8x1xf32>
    %27 = math.absf %26 : vector<8x1xf32>
    %cst_17 = arith.constant 0.000000e+00 : f32
    %28 = vector.broadcast %cst_17 : f32 to vector<8x1xf32>
    %29 = arith.subf %28, %27 : vector<8x1xf32>
    %30 = math.exp %29 : vector<8x1xf32>
    %cst_18 = arith.constant 1.000000e+00 : f32
    %31 = vector.broadcast %cst_18 : f32 to vector<8x1xf32>
    %32 = arith.addf %31, %30 : vector<8x1xf32>
    %33 = tpu.reciprocal %32 {approx = true} : vector<8x1xf32> -> vector<8x1xf32>
    %cst_19 = arith.constant 0.000000e+00 : f32
    %34 = vector.broadcast %cst_19 : f32 to vector<8x1xf32>
    %35 = arith.cmpf oge, %26, %34 : vector<8x1xf32>
    %cst_20 = arith.constant 1.000000e+00 : f32
    %36 = vector.broadcast %cst_20 : f32 to vector<8x1xf32>
    %37 = arith.subf %36, %33 : vector<8x1xf32>
    %38 = arith.select %35, %33, %37 : vector<8x1xi1>, vector<8x1xf32>
    %c0_21 = arith.constant 0 : index
    %c0_22 = arith.constant 0 : index
    %39 = vector.load %arg8[%c0_21, %c0_22] : memref<8x1xf32, #tpu.memory_space<vmem>>, vector<8x1xf32>
    tpu.vector_store %arg8[%c0_21, %c0_22], %38 {strides = array<i32>} : memref<8x1xf32, #tpu.memory_space<vmem>>, vector<8x1xf32>,
    return
  }
  func.func @transform_0(%arg0: i32) -> (i32, i32) {
    %c0_i32 = arith.constant 0 : i32
    %c0_i32_0 = arith.constant 0 : i32
    return %arg0, %c0_i32 : i32, i32
  }
  func.func @transform_1(%arg0: i32) -> (i32, i32) {
    %c0_i32 = arith.constant 0 : i32
    %c0_i32_0 = arith.constant 0 : i32
    %c0_i32_1 = arith.constant 0 : i32
    return %c0_i32, %c0_i32_0 : i32, i32
  }
  func.func @transform_2(%arg0: i32) -> (i32, i32) {
    %c0_i32 = arith.constant 0 : i32
    %c0_i32_0 = arith.constant 0 : i32
    %c0_i32_1 = arith.constant 0 : i32
    return %c0_i32, %c0_i32_0 : i32, i32
  }
  func.func @transform_3(%arg0: i32) -> (i32, i32) {
    %c0_i32 = arith.constant 0 : i32
    %c0_i32_0 = arith.constant 0 : i32
    %c0_i32_1 = arith.constant 0 : i32
    return %c0_i32, %c0_i32_0 : i32, i32
  }
  func.func @transform_4(%arg0: i32) -> (i32, i32) {
    %c0_i32 = arith.constant 0 : i32
    %c0_i32_0 = arith.constant 0 : i32
    %c0_i32_1 = arith.constant 0 : i32
    return %c0_i32, %c0_i32_0 : i32, i32
  }
  func.func @transform_5(%arg0: i32) -> (i32, i32) {
    %c0_i32 = arith.constant 0 : i32
    %c0_i32_0 = arith.constant 0 : i32
    %c0_i32_1 = arith.constant 0 : i32
    return %c0_i32, %c0_i32_0 : i32, i32
  }
  func.func @transform_6(%arg0: i32) -> (i32, i32) {
    %c0_i32 = arith.constant 0 : i32
    %c0_i32_0 = arith.constant 0 : i32
    %c0_i32_1 = arith.constant 0 : i32
    return %c0_i32, %c0_i32_0 : i32, i32
  }
  func.func @transform_7(%arg0: i32) -> (i32, i32) {
    %c0_i32 = arith.constant 0 : i32
    %c0_i32_0 = arith.constant 0 : i32
    return %arg0, %c0_i32 : i32, i32
  }
}

</mosaic_0001>

<llo_original>
// kernel: tpu_custom_call.1
$region0: #{tpu_custom_call.1}
  #allocation0 [shape = 'u32[]', space=smem, size = 0x4, offset = 0x4, fixed_abs, tag = 'smem constant byte address 0x4 - core index']
  #allocation1 [shape = 'u32[144,128]{1,0:T(1,128)}', space=vmem, size = 0x12000, scoped, tag = 'internal scratch']
  #allocation2 [shape = 'f32[1,1]{1,0:T(1,128)S(1)}', space=vmem, size = 0x200, scoped, tag = 'scoped memory for tpu_custom_call.1']
  %s0 = inlined_call_operand.hbm [shape: f32[8,128], index: 0, kind: input, shape index: {}]
  %s1 = inlined_call_operand.hbm [shape: bf16[128,128], index: 1, kind: input, shape index: {}]
  %s2 = inlined_call_operand.vmem [shape: f32[1,128], index: 2, kind: input, shape index: {}]
  %s3 = inlined_call_operand.hbm [shape: bf16[128,128], index: 3, kind: input, shape index: {}]
  %s4 = inlined_call_operand.vmem [shape: f32[1,128], index: 4, kind: input, shape index: {}]
  %s5 = inlined_call_operand.vmem [shape: f32[1,128], index: 5, kind: input, shape index: {}]
  %s6 = inlined_call_operand.<no memory space> [shape: f32[1,1], index: 6, kind: input, shape index: {}]
  %s7 = inlined_call_operand.vmem [shape: f32[8,1], index: 7, kind: output, shape index: {}]
  %s8 = sld [smem:[#allocation0]]
  $region50: #{tpu_custom_call.1} parent=0
    _
  %s10 = ssub.s32 1, %s8
  %s11 = scalar_select 0, %s10, %s8
  %v12 = vstv %s6
  %13 = vst [vmem:[#allocation2] sm:$0x1] %v12
  $region1: #{tpu_custom_call.1} parent=0
    #allocation3 [shape = 'u8[4096]{0}', space=vmem, size = 0x1000, scoped, tag = 'input window, operand 0, single buffered']
    #allocation4 [shape = 's32[1]{0}', space=sflag, size = 0x4, scoped, tag = 'scoped memory for tpu_custom_call.1']
    #allocation5 [shape = 'u8[32768]{0}', space=vmem, size = 0x8000, scoped, tag = 'input window, operand 1, single buffered']
    #allocation6 [shape = 's32[1]{0}', space=sflag, size = 0x4, scoped, tag = 'scoped memory for tpu_custom_call.1']
    #allocation7 [shape = 'u8[32768]{0}', space=vmem, size = 0x8000, scoped, tag = 'input window, operand 3, single buffered']
    %14 = vsyncpa [#allocation4], 0
    %15 = vsyncpa [#allocation6], 0
    // Predicated region
    $region2: #{tpu_custom_call.1} parent=1 // pred_check
      _
    $region3: #{tpu_custom_call.1} parent=1 // pred_check_branch
      %17 = sbr.rel (0) target = $region5
    $region4: #{tpu_custom_call.1} parent=1 // pred_region
      %s19 = ssub.s32 128, 128
      %20 = vsyncadd [#allocation4], %s19
      %s22 = sshll.u32 [#allocation3], 4
      %s23 = int_to_ptr.vmem [resolvable:$true] %s22
      %25 = dma.hbm_to_vmem [thread:$0]  %s0, 128, %s23, [#allocation4]
    $region5: #{tpu_custom_call.1} parent=1 // pred_fallthru
      _
    // Predicated region
    $region6: #{tpu_custom_call.1} parent=1 // pred_check
      _
    $region7: #{tpu_custom_call.1} parent=1 // pred_check_branch
      %27 = sbr.rel (0) target = $region9
    $region8: #{tpu_custom_call.1} parent=1 // pred_region
      %s29 = ssub.s32 1024, 1024
      %30 = vsyncadd [#allocation6], %s29
      %s31 = sshll.u32 [#allocation5], 4
      %s32 = int_to_ptr.vmem [resolvable:$true] %s31
      %37 = dma.hbm_to_vmem [thread:$0]  %s1, 1024, %s32, [#allocation6], 64, 64, 4
    $region9: #{tpu_custom_call.1} parent=1 // pred_fallthru
      _
    // Predicated region
    $region10: #{tpu_custom_call.1} parent=1 // pred_check
      _
    $region11: #{tpu_custom_call.1} parent=1 // pred_check_branch
      %39 = sbr.rel (0) target = $region13
    $region12: #{tpu_custom_call.1} parent=1 // pred_region
      _
    $region13: #{tpu_custom_call.1} parent=1 // pred_fallthru
      _
    // Predicated region
    $region14: #{tpu_custom_call.1} parent=1 // pred_check
      _
    $region15: #{tpu_custom_call.1} parent=1 // pred_check_branch
      %41 = sbr.rel (0) target = $region17
    $region16: #{tpu_custom_call.1} parent=1 // pred_region
      %s43 = ssub.s32 1024, 1024
      %44 = vsyncadd [#allocation6], %s43
      %s45 = sshll.u32 [#allocation7], 4
      %s46 = int_to_ptr.vmem [resolvable:$true] %s45
      %51 = dma.hbm_to_vmem [thread:$0]  %s3, 1024, %s46, [#allocation6], 64, 64, 4
    $region17: #{tpu_custom_call.1} parent=1 // pred_fallthru
      _
    // Predicated region
    $region18: #{tpu_custom_call.1} parent=1 // pred_check
      _
    $region19: #{tpu_custom_call.1} parent=1 // pred_check_branch
      %53 = sbr.rel (0) target = $region21
    $region20: #{tpu_custom_call.1} parent=1 // pred_region
      _
    $region21: #{tpu_custom_call.1} parent=1 // pred_fallthru
      _
    // Predicated region
    $region22: #{tpu_custom_call.1} parent=1 // pred_check
      _
    $region23: #{tpu_custom_call.1} parent=1 // pred_check_branch
      %55 = sbr.rel (0) target = $region25
    $region24: #{tpu_custom_call.1} parent=1 // pred_region
      _
    $region25: #{tpu_custom_call.1} parent=1 // pred_fallthru
      _
    // Predicated region
    $region26: #{tpu_custom_call.1} parent=1 // pred_check
      _
    $region27: #{tpu_custom_call.1} parent=1 // pred_check_branch
      %57 = sbr.rel (0) target = $region29
    $region28: #{tpu_custom_call.1} parent=1 // pred_region
      _
    $region29: #{tpu_custom_call.1} parent=1 // pred_fallthru
      _
    // Predicated region
    $region30: #{tpu_custom_call.1} parent=1 // pred_check
      _
    $region31: #{tpu_custom_call.1} parent=1 // pred_check_branch
      %59 = sbr.rel (0) target = $region33
    $region32: #{tpu_custom_call.1} parent=1 // pred_region
      %60 = dma.done [#allocation4], 128
    $region33: #{tpu_custom_call.1} parent=1 // pred_fallthru
      _
    // Predicated region
    $region34: #{tpu_custom_call.1} parent=1 // pred_check
      _
    $region35: #{tpu_custom_call.1} parent=1 // pred_check_branch
      %62 = sbr.rel (0) target = $region37
    $region36: #{tpu_custom_call.1} parent=1 // pred_region
      %63 = dma.done [#allocation6], 1024
    $region37: #{tpu_custom_call.1} parent=1 // pred_fallthru
      _
    // Predicated region
    $region38: #{tpu_custom_call.1} parent=1 // pred_check
      _
    $region39: #{tpu_custom_call.1} parent=1 // pred_check_branch
      %65 = sbr.rel (0) target = $region41
    $region40: #{tpu_custom_call.1} parent=1 // pred_region
      %66 = dma.done [#allocation6], 1024
    $region41: #{tpu_custom_call.1} parent=1 // pred_fallthru
      _
    %v68 = vld [vmem:[#allocation3] sm:$0xff]
    %v69 = vld [vmem:[#allocation5] sm:$0xf]
    %v70 = vld [vmem:[#allocation5 + $0x4] sm:$0xf]
    %v71 = vld [vmem:[#allocation5 + $0x8] sm:$0xf]
    %v72 = vld [vmem:[#allocation5 + $0xc] sm:$0xf]
    %v73 = vld [vmem:[#allocation5 + $0x10] sm:$0xf]
    %v74 = vld [vmem:[#allocation5 + $0x14] sm:$0xf]
    %v75 = vld [vmem:[#allocation5 + $0x18] sm:$0xf]
    %v76 = vld [vmem:[#allocation5 + $0x1c] sm:$0xf]
    %v77 = vld [vmem:[#allocation5 + $0x20] sm:$0xf]
    %v78 = vld [vmem:[#allocation5 + $0x24] sm:$0xf]
    %v79 = vld [vmem:[#allocation5 + $0x28] sm:$0xf]
    %v80 = vld [vmem:[#allocation5 + $0x2c] sm:$0xf]
    %v81 = vld [vmem:[#allocation5 + $0x30] sm:$0xf]
    %v82 = vld [vmem:[#allocation5 + $0x34] sm:$0xf]
    %v83 = vld [vmem:[#allocation5 + $0x38] sm:$0xf]
    %v84 = vld [vmem:[#allocation5 + $0x3c] sm:$0xf]
    %v85 = vld [vmem:[%s2] sm:$0x1]
    %v86 = vpack.c.bf16 %v68, %v68
    %v88 = vlaneseq
    %v89 = vshrl.u32 %v88, 7
    %v90 = vsub.s32 0, %v89
    %v91 = vrot.slane %v85, %v90
    %v109 = vunpack.c.l.b16 %v69
    %v110 = vunpack.c.l.b16 %v70
    %v111 = vunpack.c.l.b16 %v71
    %v112 = vunpack.c.l.b16 %v72
    %v113 = vunpack.c.l.b16 %v73
    %v114 = vunpack.c.l.b16 %v74
    %v115 = vunpack.c.l.b16 %v75
    %v116 = vunpack.c.l.b16 %v76
    %v117 = vunpack.c.l.b16 %v77
    %v118 = vunpack.c.l.b16 %v78
    %v119 = vunpack.c.l.b16 %v79
    %v120 = vunpack.c.l.b16 %v80
    %v121 = vunpack.c.l.b16 %v81
    %v122 = vunpack.c.l.b16 %v82
    %v123 = vunpack.c.l.b16 %v83
    %v124 = vunpack.c.l.b16 %v84
    %v125 = vpack.c.b16 %v110, %v109
    %v126 = vpack.c.b16 %v112, %v111
    %v127 = vpack.c.b16 %v114, %v113
    %v128 = vpack.c.b16 %v116, %v115
    %v129 = vpack.c.b16 %v118, %v117
    %v130 = vpack.c.b16 %v120, %v119
    %v131 = vpack.c.b16 %v122, %v121
    %v132 = vpack.c.b16 %v124, %v123
    %141 = vmatprep.subr.bf16.mxu0 0
    %142 = vmatpush1.bf16.msra.mxu0 %v125
    %143 = vmatprep.subr.bf16.mxu0 0
    %144 = vmatpush1.bf16.msra.mxu0 %v126
    %145 = vmatprep.subr.bf16.mxu0 0
    %146 = vmatpush1.bf16.msra.mxu0 %v127
    %147 = vmatprep.subr.bf16.mxu0 0
    %148 = vmatpush1.bf16.msra.mxu0 %v128
    %149 = vmatprep.subr.bf16.mxu0 0
    %150 = vmatpush1.bf16.msra.mxu0 %v129
    %151 = vmatprep.subr.bf16.mxu0 0
    %152 = vmatpush1.bf16.msra.mxu0 %v130
    %153 = vmatprep.subr.bf16.mxu0 0
    %154 = vmatpush1.bf16.msra.mxu0 %v131
    %155 = vmatprep.subr.bf16.mxu0 0
    %156 = vmatpush1.bf16.msra.mxu0 %v132
    %157 = vmatprep.subr.bf16.mxu0 0
    %158 = vmatpush1.bf16.msra.mxu0 0
    %159 = vmatprep.subr.bf16.mxu0 0
    %160 = vmatpush1.bf16.msra.mxu0 0
    %161 = vmatprep.subr.bf16.mxu0 0
    %162 = vmatpush1.bf16.msra.mxu0 0
    %163 = vmatprep.subr.bf16.mxu0 0
    %164 = vmatpush1.bf16.msra.mxu0 0
    %165 = vmatprep.subr.bf16.mxu0 0
    %166 = vmatpush1.bf16.msra.mxu0 0
    %167 = vmatprep.subr.bf16.mxu0 0
    %168 = vmatpush1.bf16.msra.mxu0 0
    %169 = vmatprep.subr.bf16.mxu0 0
    %170 = vmatpush1.bf16.msra.mxu0 0
    %171 = vmatprep.subr.bf16.mxu0 0
    %172 = vmatpush1.bf16.msra.mxu0 0
    %173 = vmatprep.mubr.bf16.mxu0 0
    %174 = vmatmul.mubr.bf16.gmra.mrb[0].mxu0 %v86
    %v175 = vpop.f32.mrb[0].mxu0
    %v176 = vadd.f32 %v91, %v175
    %v177 = vpop.f32.mrb[0].mxu0
    %v178 = vpop.f32.mrb[0].mxu0
    %v179 = vpop.f32.mrb[0].mxu0
    %180 = vdwg.mxu0
    %v181 = vmul.f32 %v176, 0.2
    %v182 = vmax.f32 %v176, %v181
    %v183 = vld [vmem:[#allocation7] sm:$0xf]
    %v184 = vld [vmem:[#allocation7 + $0x4] sm:$0xf]
    %v185 = vld [vmem:[#allocation7 + $0x8] sm:$0xf]
    %v186 = vld [vmem:[#allocation7 + $0xc] sm:$0xf]
    %v187 = vld [vmem:[#allocation7 + $0x10] sm:$0xf]
    %v188 = vld [vmem:[#allocation7 + $0x14] sm:$0xf]
    %v189 = vld [vmem:[#allocation7 + $0x18] sm:$0xf]
    %v190 = vld [vmem:[#allocation7 + $0x1c] sm:$0xf]
    %v191 = vld [vmem:[#allocation7 + $0x20] sm:$0xf]
    %v192 = vld [vmem:[#allocation7 + $0x24] sm:$0xf]
    %v193 = vld [vmem:[#allocation7 + $0x28] sm:$0xf]
    %v194 = vld [vmem:[#allocation7 + $0x2c] sm:$0xf]
    %v195 = vld [vmem:[#allocation7 + $0x30] sm:$0xf]
    %v196 = vld [vmem:[#allocation7 + $0x34] sm:$0xf]
    %v197 = vld [vmem:[#allocation7 + $0x38] sm:$0xf]
    %v198 = vld [vmem:[#allocation7 + $0x3c] sm:$0xf]
    %v199 = vld [vmem:[%s4] sm:$0x1]
    %v200 = vpack.c.bf16 %v182, %v182
    %v202 = vlaneseq
    %v203 = vshrl.u32 %v202, 7
    %v204 = vsub.s32 0, %v203
    %v205 = vrot.slane %v199, %v204
    %v223 = vunpack.c.l.b16 %v183
    %v224 = vunpack.c.l.b16 %v184
    %v225 = vunpack.c.l.b16 %v185
    %v226 = vunpack.c.l.b16 %v186
    %v227 = vunpack.c.l.b16 %v187
    %v228 = vunpack.c.l.b16 %v188
    %v229 = vunpack.c.l.b16 %v189
    %v230 = vunpack.c.l.b16 %v190
    %v231 = vunpack.c.l.b16 %v191
    %v232 = vunpack.c.l.b16 %v192
    %v233 = vunpack.c.l.b16 %v193
    %v234 = vunpack.c.l.b16 %v194
    %v235 = vunpack.c.l.b16 %v195
    %v236 = vunpack.c.l.b16 %v196
    %v237 = vunpack.c.l.b16 %v197
    %v238 = vunpack.c.l.b16 %v198
    %v239 = vpack.c.b16 %v224, %v223
    %v240 = vpack.c.b16 %v226, %v225
    %v241 = vpack.c.b16 %v228, %v227
    %v242 = vpack.c.b16 %v230, %v229
    %v243 = vpack.c.b16 %v232, %v231
    %v244 = vpack.c.b16 %v234, %v233
    %v245 = vpack.c.b16 %v236, %v235
    %v246 = vpack.c.b16 %v238, %v237
    %255 = vmatprep.subr.bf16.mxu0 0
    %256 = vmatpush1.bf16.msra.mxu0 %v239
    %257 = vmatprep.subr.bf16.mxu0 0
    %258 = vmatpush1.bf16.msra.mxu0 %v240
    %259 = vmatprep.subr.bf16.mxu0 0
    %260 = vmatpush1.bf16.msra.mxu0 %v241
    %261 = vmatprep.subr.bf16.mxu0 0
    %262 = vmatpush1.bf16.msra.mxu0 %v242
    %263 = vmatprep.subr.bf16.mxu0 0
    %264 = vmatpush1.bf16.msra.mxu0 %v243
    %265 = vmatprep.subr.bf16.mxu0 0
    %266 = vmatpush1.bf16.msra.mxu0 %v244
    %267 = vmatprep.subr.bf16.mxu0 0
    %268 = vmatpush1.bf16.msra.mxu0 %v245
    %269 = vmatprep.subr.bf16.mxu0 0
    %270 = vmatpush1.bf16.msra.mxu0 %v246
    %271 = vmatprep.subr.bf16.mxu0 0
    %272 = vmatpush1.bf16.msra.mxu0 0
    %273 = vmatprep.subr.bf16.mxu0 0
    %274 = vmatpush1.bf16.msra.mxu0 0
    %275 = vmatprep.subr.bf16.mxu0 0
    %276 = vmatpush1.bf16.msra.mxu0 0
    %277 = vmatprep.subr.bf16.mxu0 0
    %278 = vmatpush1.bf16.msra.mxu0 0
    %279 = vmatprep.subr.bf16.mxu0 0
    %280 = vmatpush1.bf16.msra.mxu0 0
    %281 = vmatprep.subr.bf16.mxu0 0
    %282 = vmatpush1.bf16.msra.mxu0 0
    %283 = vmatprep.subr.bf16.mxu0 0
    %284 = vmatpush1.bf16.msra.mxu0 0
    %285 = vmatprep.subr.bf16.mxu0 0
    %286 = vmatpush1.bf16.msra.mxu0 0
    %287 = vmatprep.mubr.bf16.mxu0 0
    %288 = vmatmul.mubr.bf16.gmra.mrb[0].mxu0 %v200
    %v289 = vpop.f32.mrb[0].mxu0
    %v290 = vadd.f32 %v205, %v289
    %v291 = vpop.f32.mrb[0].mxu0
    %v292 = vpop.f32.mrb[0].mxu0
    %v293 = vpop.f32.mrb[0].mxu0
    %294 = vdwg.mxu0
    %v295 = vmul.f32 %v290, 0.2
    %v296 = vmax.f32 %v290, %v295
    %v297 = vld [vmem:[%s5] sm:$0x1]
    %v298 = vld [vmem:[#allocation2] sm:$0x1]
    %v300 = vlaneseq
    %v301 = vshrl.u32 %v300, 7
    %v302 = vsub.s32 0, %v301
    %v303 = vrot.slane %v297, %v302
    %v305 = vmul.f32 %v296, %v303
    %306 = vadd.xlane.f32.xlu0 %v305
    %v307 = vpop.xlane.xlu0 %306
    %v309 = vlaneseq
    %v310 = vshrl.u32 %v309, 7
    %v311 = vsub.s32 0, %v310
    %v312 = vrot.slane %v298, %v311
    %v314 = vadd.f32 %v307, %v312
    %v315 = vand.u32 2147483647, %v314
    %v316 = vsub.f32 0.0, %v315
    %v317 = vmul.f32 %v316, 1.442695
    %v318 = vpow.pop %v317
    %v319 = vadd.f32 %v318, 1.0
    %v320 = vrcp.pop %v319
    %vm321 = vcmp.ge.f32.partialorder %v314, 0.0
    %v322 = vsub.f32 1.0, %v320
    %v323 = vsel %vm321, %v320, %v322
    %vm324 = vcmask 7168
    %325 = vst.msk [vmem:[%s7] sm:$0xff] %vm324, %v323
    // Predicated region
    $region42: #{tpu_custom_call.1} parent=1 // pred_check
      _
    $region43: #{tpu_custom_call.1} parent=1 // pred_check_branch
      %327 = sbr.rel (0) target = $region45
    $region44: #{tpu_custom_call.1} parent=1 // pred_region
      _
    $region45: #{tpu_custom_call.1} parent=1 // pred_fallthru
      _
    // Predicated region
    $region46: #{tpu_custom_call.1} parent=1 // pred_check
      _
    $region47: #{tpu_custom_call.1} parent=1 // pred_check_branch
      %329 = sbr.rel (0) target = $region49
    $region48: #{tpu_custom_call.1} parent=1 // pred_region
      _
    $region49: #{tpu_custom_call.1} parent=1 // pred_fallthru
      _
    %330 = vsyncpa [#allocation4], 1
    %331 = vsyncpa [#allocation6], 1

</llo_original>
